<compile_context>
chip_gen: v6e
topology: v6e:2x2x1
jax: 0.10.0
libtpu: 0.0.40
codegen_flags: <defaults>
</compile_context>

<pallas_src>
import jax
import jax.numpy as jnp
from jax import lax
from jax.experimental import pallas as pl
from jax.experimental.pallas import tpu as pltpu

# ----------------------------- configuration ------------------------------
N, IN_CH, H, W = 2, 4, 8, 16
HIDDEN = 32
OUT_CH = 4
NUM_BLOCKS = 2
DTYPE = jnp.float32


# ------------------------------ Pallas kernel ------------------------------
def _shifted_taps(a, not_first, not_last):
    """Stack the three conv taps along the contraction axis.

    a: (C, M) activations, lanes = row-major flattened (n, h, w).
    Returns (3*C, M):  rows [0:C]   = x[w-1]  (zero at w == 0)
                       rows [C:2C]  = x[w]
                       rows [2C:3C] = x[w+1]  (zero at w == W-1)
    The +-1 shift is a 1-lane rotate + boundary select (XLU/VPU work only;
    no per-iteration zero-row buffers are materialized).
    """
    c = a.shape[0]
    zcol = jnp.zeros((c, 1), dtype=a.dtype)
    a_m1 = jnp.where(not_first, jnp.concatenate([zcol, a[:, :-1]], axis=1), 0.0)
    a_p1 = jnp.where(not_last, jnp.concatenate([a[:, 1:], zcol], axis=1), 0.0)
    return jnp.concatenate([a_m1, a, a_p1], axis=0)


def conv_resnet_kernel(x_ref, w_init_ref, b_init_ref, w3_ref, b3_ref,
                       w_fin_ref, b_fin_ref, out_ref):
    x = x_ref[...]                                       # (Cin, ML), lane-dense
    ml = x.shape[1]

    # Row-boundary masks, computed once at full (Ch, ML) shape so no broadcast
    # is re-materialized inside the block loop.
    wpos = lax.broadcasted_iota(jnp.int32, (HIDDEN, ml), 1) % W
    not_first = wpos != 0
    not_last = wpos != (W - 1)

    # initial 1x1 conv: (Ch, Cin) @ (Cin, ML)
    t = jnp.dot(w_init_ref[...], x, preferred_element_type=jnp.float32)
    t = t + b_init_ref[...]                              # (Ch, ML)

    # residual blocks (statically unrolled)
    for b in range(NUM_BLOCKS):
        a = jnp.maximum(t, 0.0)                          # relu
        a3 = _shifted_taps(a, not_first, not_last)       # (3*Ch, ML)
        c1 = jnp.dot(w3_ref[b, 0], a3, preferred_element_type=jnp.float32)
        c1 = c1 + b3_ref[b, 0]
        a2 = jnp.maximum(c1, 0.0)                        # relu (dropout p=0)
        a23 = _shifted_taps(a2, not_first, not_last)
        c2 = jnp.dot(w3_ref[b, 1], a23, preferred_element_type=jnp.float32)
        c2 = c2 + b3_ref[b, 1]
        t = t + c2                                       # residual add

    # final 1x1 conv: (Cout, Ch) @ (Ch, ML)  -> lane-dense (Cout, ML) store
    out = jnp.dot(w_fin_ref[...], t, preferred_element_type=jnp.float32)
    out_ref[...] = (out + b_fin_ref[...]).astype(out_ref.dtype)


def conv_residual_net_vb(x_nchw, params):
    """Forward pass. x_nchw: (N, IN_CH, H, W) -> (N, OUT_CH*H*W)."""
    n, cin, h, w = x_nchw.shape
    assert cin == IN_CH and w == W
    m_total = n * h * w

    # channel-major, lane-flattened input: (Cin, N*H*W)
    x_k = jnp.transpose(x_nchw, (1, 0, 2, 3)).reshape(cin, m_total)

    # ---- pre-pack weights to the exact 2-D shapes the kernel consumes ----
    def pack_w3(wt):  # torch (Co, Ci, 1, 3) -> (Co, 3*Ci), tap-major columns
        co, ci = wt.shape[0], wt.shape[1]
        return jnp.transpose(wt[:, :, 0, :], (0, 2, 1)).reshape(co, 3 * ci)

    w_init_k = params["w_init"][:, :, 0, 0]                       # (Ch, Cin)
    b_init_k = params["b_init"][:, None]                          # (Ch, 1)
    w3 = jnp.stack([jnp.stack([pack_w3(params["w1"][b]),
                               pack_w3(params["w2"][b])])
                    for b in range(NUM_BLOCKS)])                  # (NB, 2, Ch, 3*Ch)
    b3 = jnp.stack([jnp.stack([params["b1"][b][:, None],
                               params["b2"][b][:, None]])
                    for b in range(NUM_BLOCKS)])                  # (NB, 2, Ch, 1)
    w_fin_k = params["w_fin"][:, :, 0, 0]                         # (Cout, Ch)
    b_fin_k = params["b_fin"][:, None]                            # (Cout, 1)

    # 2 lane-blocks: keeps both v7x TensorCores busy; each block holds whole
    # W-rows (ml % W == 0) so the conv shifts never cross a block boundary.
    grid = 2
    ml = m_total // grid
    assert m_total % grid == 0 and ml % w == 0 and ml % 128 == 0

    full = lambda arr: pl.BlockSpec(arr.shape, lambda i, _n=arr.ndim: (0,) * _n)

    out_k = pl.pallas_call(
        conv_resnet_kernel,
        out_shape=jax.ShapeDtypeStruct((OUT_CH, m_total), DTYPE),
        grid_spec=pltpu.PrefetchScalarGridSpec(
            num_scalar_prefetch=0,
            grid=(grid,),
            in_specs=[
                pl.BlockSpec((cin, ml), lambda i: (0, i)),
                full(w_init_k),
                full(b_init_k),
                full(w3),
                full(b3),
                full(w_fin_k),
                full(b_fin_k),
            ],
            out_specs=pl.BlockSpec((OUT_CH, ml), lambda i: (0, i)),
        ),
        compiler_params=pltpu.CompilerParams(
            dimension_semantics=("parallel",)),
    )(x_k, w_init_k, b_init_k, w3, b3, w_fin_k, b_fin_k)

    # (Cout, N*H*W) -> (N, Cout, H, W) -> flatten like torch's .view(N, -1)
    out_nchw = jnp.transpose(out_k.reshape(OUT_CH, n, h, w), (1, 0, 2, 3))
    return out_nchw.reshape(n, -1)


# --------------------------- pure-JAX reference ----------------------------
def reference_forward(x_nchw, params):
    def conv2d(x, wt, b, pad_w):
        y = lax.conv_general_dilated(
            x, wt, window_strides=(1, 1),
            padding=((0, 0), (pad_w, pad_w)),
            dimension_numbers=("NCHW", "OIHW", "NCHW"))
        return y + b[None, :, None, None]

    t = conv2d(x_nchw, params["w_init"], params["b_init"], 0)
    for b in range(NUM_BLOCKS):
        a = jax.nn.relu(t)
        c1 = conv2d(a, params["w1"][b], params["b1"][b], 1)
        a2 = jax.nn.relu(c1)
        c2 = conv2d(a2, params["w2"][b], params["b2"][b], 1)
        t = t + c2
    out = conv2d(t, params["w_fin"], params["b_fin"], 0)
    return out.reshape(out.shape[0], -1)


# ------------------------------ param init ---------------------------------
def make_params(key):
    ks = jax.random.split(key, 4 + 4 * NUM_BLOCKS)
    it = iter(ks)
    u = lambda k, shp, a: jax.random.uniform(k, shp, DTYPE, -a, a)
    params = {
        "w_init": u(next(it), (HIDDEN, IN_CH, 1, 1), 0.5),
        "b_init": u(next(it), (HIDDEN,), 0.5),
        "w1": [], "b1": [], "w2": [], "b2": [],
        "w_fin": u(next(it), (OUT_CH, HIDDEN, 1, 1), 0.2),
        "b_fin": u(next(it), (OUT_CH,), 0.2),
    }
    for _ in range(NUM_BLOCKS):
        params["w1"].append(u(next(it), (HIDDEN, HIDDEN, 1, 3), 0.1))
        params["b1"].append(u(next(it), (HIDDEN,), 0.1))
        # second conv in each block is "zero initialized": uniform(-1e-3, 1e-3)
        params["w2"].append(u(next(it), (HIDDEN, HIDDEN, 1, 3), 1e-3))
        params["b2"].append(u(next(it), (HIDDEN,), 1e-3))
    return params


# --------------------------------- main -------------------------------------
if __name__ == "__main__":
    key = jax.random.PRNGKey(0)
    kx, kp = jax.random.split(key)
    x = jax.random.normal(kx, (N, IN_CH, H, W), dtype=DTYPE)
    params = make_params(kp)

    out = conv_residual_net_vb(x, params)
    out = jax.block_until_ready(out)
    assert out.shape == (N, OUT_CH * H * W), out.shape

    ref = jax.block_until_ready(reference_forward(x, params))
    assert jnp.allclose(out, ref, rtol=2e-3, atol=2e-3), float(
        jnp.max(jnp.abs(out - ref)))

    print("KERNEL_OK")
</pallas_src>

<mosaic_0001>
module attributes {stable_mosaic.version = 11 : i64} {
  func.func @conv_resnet_kernel(%arg0: i32, %arg1: memref<4x128xf32, #tpu.memory_space<vmem>>, %arg2: memref<32x4xf32, #tpu.memory_space<vmem>>, %arg3: memref<32x1xf32, #tpu.memory_space<vmem>>, %arg4: memref<2x2x32x96xf32, #tpu.memory_space<vmem>>, %arg5: memref<2x2x32x1xf32, #tpu.memory_space<vmem>>, %arg6: memref<4x32xf32, #tpu.memory_space<vmem>>, %arg7: memref<4x1xf32, #tpu.memory_space<vmem>>, %arg8: memref<4x128xf32, #tpu.memory_space<vmem>>) attributes {dimension_semantics = [#tpu.dimension_semantics<parallel>], iteration_bounds = array<i64: 2>, scalar_prefetch = 0 : i64, scratch_operands = 0 : i64, tpu.core_type = #tpu.core_type<tc>, window_params = [{transform_indices = @transform_0, window_bounds = array<i64: 4, 128>}, {pipeline_mode = #tpu.pipeline_mode<synchronous>, transform_indices = @transform_1, window_bounds = array<i64: 32, 4>}, {pipeline_mode = #tpu.pipeline_mode<synchronous>, transform_indices = @transform_2, window_bounds = array<i64: 32, 1>}, {pipeline_mode = #tpu.pipeline_mode<synchronous>, transform_indices = @transform_3, window_bounds = array<i64: 2, 2, 32, 96>}, {pipeline_mode = #tpu.pipeline_mode<synchronous>, transform_indices = @transform_4, window_bounds = array<i64: 2, 2, 32, 1>}, {pipeline_mode = #tpu.pipeline_mode<synchronous>, transform_indices = @transform_5, window_bounds = array<i64: 4, 32>}, {pipeline_mode = #tpu.pipeline_mode<synchronous>, transform_indices = @transform_6, window_bounds = array<i64: 4, 1>}, {transform_indices = @transform_7, window_bounds = array<i64: 4, 128>}]} {
    %c0 = arith.constant 0 : index
    %c0_0 = arith.constant 0 : index
    %0 = vector.load %arg1[%c0, %c0_0] : memref<4x128xf32, #tpu.memory_space<vmem>>, vector<4x128xf32>
    %1 = tpu.iota {dimensions = array<i32: 1>} : vector<32x128xi32>
    %c16_i32 = arith.constant 16 : i32
    %c0_i32 = arith.constant 0 : i32
    %2 = arith.cmpi eq, %c16_i32, %c0_i32 : i32
    %c1_i32 = arith.constant 1 : i32
    %3 = arith.select %2, %c1_i32, %c16_i32 : i32
    %4 = vector.broadcast %3 : i32 to vector<32x128xi32>
    %5 = arith.remsi %1, %4 : vector<32x128xi32>
    %c0_i32_1 = arith.constant 0 : i32
    %6 = vector.broadcast %c0_i32_1 : i32 to vector<32x128xi32>
    %7 = arith.cmpi ne, %5, %6 : vector<32x128xi32>
    %c0_i32_2 = arith.constant 0 : i32
    %8 = vector.broadcast %c0_i32_2 : i32 to vector<32x128xi32>
    %9 = arith.cmpi slt, %5, %8 : vector<32x128xi32>
    %c0_i32_3 = arith.constant 0 : i32
    %10 = arith.cmpi slt, %3, %c0_i32_3 : i32
    %11 = vector.broadcast %10 : i1 to vector<32x128xi1>
    %12 = vector.broadcast %11 : vector<32x128xi1> to vector<32x128xi1>
    %13 = arith.xori %9, %12 : vector<32x128xi1>
    %14 = arith.andi %13, %7 : vector<32x128xi1>
    %15 = vector.broadcast %3 : i32 to vector<32x128xi32>
    %16 = arith.addi %5, %15 : vector<32x128xi32>
    %17 = arith.select %14, %16, %5 : vector<32x128xi1>, vector<32x128xi32>
    %c0_i32_4 = arith.constant 0 : i32
    %18 = vector.broadcast %c0_i32_4 : i32 to vector<32x128xi32>
    %19 = arith.cmpi ne, %17, %18 : vector<32x128xi32>
    %c15_i32 = arith.constant 15 : i32
    %20 = vector.broadcast %c15_i32 : i32 to vector<32x128xi32>
    %21 = arith.cmpi ne, %17, %20 : vector<32x128xi32>
    %c0_5 = arith.constant 0 : index
    %c0_6 = arith.constant 0 : index
    %22 = vector.load %arg2[%c0_5, %c0_6] : memref<32x4xf32, #tpu.memory_space<vmem>>, vector<32x4xf32>
    %cst = arith.constant dense<0.000000e+00> : vector<32x128xf32>
    %23 = tpu.matmul %22, %0, %cst {dimension_numbers = #tpu.dot_dimension_numbers<[1], [0], [0], [1], [0, 0, 1, 1], [], []>} : vector<32x4xf32>, vector<4x128xf32>, vector<32x128xf32> -> vector<32x128xf32>
    %c0_7 = arith.constant 0 : index
    %c0_8 = arith.constant 0 : index
    %24 = vector.load %arg3[%c0_7, %c0_8] : memref<32x1xf32, #tpu.memory_space<vmem>>, vector<32x1xf32>
    %25 = vector.broadcast %24 : vector<32x1xf32> to vector<32x128xf32>
    %26 = arith.addf %23, %25 : vector<32x128xf32>
    %cst_9 = arith.constant 0.000000e+00 : f32
    %27 = vector.broadcast %cst_9 : f32 to vector<32x128xf32>
    %28 = arith.maximumf %26, %27 : vector<32x128xf32>
    %cst_10 = arith.constant 0.000000e+00 : f32
    %29 = vector.broadcast %cst_10 : f32 to vector<32x1xf32>
    %30 = vector.extract_strided_slice %28 {offsets = [0, 0], sizes = [32, 127], strides = [1, 1]} : vector<32x128xf32> to vector<32x127xf32>
    %31 = tpu.concatenate %29, %30 in 1 : vector<32x1xf32>, vector<32x127xf32> -> vector<32x128xf32>
    %cst_11 = arith.constant 0.000000e+00 : f32
    %32 = vector.broadcast %cst_11 : f32 to vector<32x128xf32>
    %33 = arith.select %19, %31, %32 : vector<32x128xi1>, vector<32x128xf32>
    %34 = vector.extract_strided_slice %28 {offsets = [0, 1], sizes = [32, 127], strides = [1, 1]} : vector<32x128xf32> to vector<32x127xf32>
    %35 = tpu.concatenate %34, %29 in 1 : vector<32x127xf32>, vector<32x1xf32> -> vector<32x128xf32>
    %cst_12 = arith.constant 0.000000e+00 : f32
    %36 = vector.broadcast %cst_12 : f32 to vector<32x128xf32>
    %37 = arith.select %21, %35, %36 : vector<32x128xi1>, vector<32x128xf32>
    %38 = tpu.concatenate %33, %28, %37 in 0 : vector<32x128xf32>, vector<32x128xf32>, vector<32x128xf32> -> vector<96x128xf32>
    %c0_13 = arith.constant 0 : index
    %c0_14 = arith.constant 0 : index
    %c0_15 = arith.constant 0 : index
    %c0_16 = arith.constant 0 : index
    %39 = vector.load %arg4[%c0_13, %c0_14, %c0_15, %c0_16] : memref<2x2x32x96xf32, #tpu.memory_space<vmem>>, vector<1x1x32x96xf32>
    %40 = vector.shape_cast %39 : vector<1x1x32x96xf32> to vector<32x96xf32>
    %cst_17 = arith.constant dense<0.000000e+00> : vector<32x128xf32>
    %41 = tpu.matmul %40, %38, %cst_17 {dimension_numbers = #tpu.dot_dimension_numbers<[1], [0], [0], [1], [0, 0, 1, 1], [], []>} : vector<32x96xf32>, vector<96x128xf32>, vector<32x128xf32> -> vector<32x128xf32>
    %c0_18 = arith.constant 0 : index
    %c0_19 = arith.constant 0 : index
    %c0_20 = arith.constant 0 : index
    %c0_21 = arith.constant 0 : index
    %42 = vector.load %arg5[%c0_18, %c0_19, %c0_20, %c0_21] : memref<2x2x32x1xf32, #tpu.memory_space<vmem>>, vector<1x1x32x1xf32>
    %43 = vector.shape_cast %42 : vector<1x1x32x1xf32> to vector<32x1xf32>
    %44 = vector.broadcast %43 : vector<32x1xf32> to vector<32x128xf32>
    %45 = arith.addf %41, %44 : vector<32x128xf32>
    %cst_22 = arith.constant 0.000000e+00 : f32
    %46 = vector.broadcast %cst_22 : f32 to vector<32x128xf32>
    %47 = arith.maximumf %45, %46 : vector<32x128xf32>
    %cst_23 = arith.constant 0.000000e+00 : f32
    %48 = vector.broadcast %cst_23 : f32 to vector<32x1xf32>
    %49 = vector.extract_strided_slice %47 {offsets = [0, 0], sizes = [32, 127], strides = [1, 1]} : vector<32x128xf32> to vector<32x127xf32>
    %50 = tpu.concatenate %48, %49 in 1 : vector<32x1xf32>, vector<32x127xf32> -> vector<32x128xf32>
    %cst_24 = arith.constant 0.000000e+00 : f32
    %51 = vector.broadcast %cst_24 : f32 to vector<32x128xf32>
    %52 = arith.select %19, %50, %51 : vector<32x128xi1>, vector<32x128xf32>
    %53 = vector.extract_strided_slice %47 {offsets = [0, 1], sizes = [32, 127], strides = [1, 1]} : vector<32x128xf32> to vector<32x127xf32>
    %54 = tpu.concatenate %53, %48 in 1 : vector<32x127xf32>, vector<32x1xf32> -> vector<32x128xf32>
    %cst_25 = arith.constant 0.000000e+00 : f32
    %55 = vector.broadcast %cst_25 : f32 to vector<32x128xf32>
    %56 = arith.select %21, %54, %55 : vector<32x128xi1>, vector<32x128xf32>
    %57 = tpu.concatenate %52, %47, %56 in 0 : vector<32x128xf32>, vector<32x128xf32>, vector<32x128xf32> -> vector<96x128xf32>
    %c0_26 = arith.constant 0 : index
    %c1 = arith.constant 1 : index
    %c0_27 = arith.constant 0 : index
    %c0_28 = arith.constant 0 : index
    %58 = vector.load %arg4[%c0_26, %c1, %c0_27, %c0_28] : memref<2x2x32x96xf32, #tpu.memory_space<vmem>>, vector<1x1x32x96xf32>
    %59 = vector.shape_cast %58 : vector<1x1x32x96xf32> to vector<32x96xf32>
    %cst_29 = arith.constant dense<0.000000e+00> : vector<32x128xf32>
    %60 = tpu.matmul %59, %57, %cst_29 {dimension_numbers = #tpu.dot_dimension_numbers<[1], [0], [0], [1], [0, 0, 1, 1], [], []>} : vector<32x96xf32>, vector<96x128xf32>, vector<32x128xf32> -> vector<32x128xf32>
    %c0_30 = arith.constant 0 : index
    %c1_31 = arith.constant 1 : index
    %c0_32 = arith.constant 0 : index
    %c0_33 = arith.constant 0 : index
    %61 = vector.load %arg5[%c0_30, %c1_31, %c0_32, %c0_33] : memref<2x2x32x1xf32, #tpu.memory_space<vmem>>, vector<1x1x32x1xf32>
    %62 = vector.shape_cast %61 : vector<1x1x32x1xf32> to vector<32x1xf32>
    %63 = vector.broadcast %62 : vector<32x1xf32> to vector<32x128xf32>
    %64 = arith.addf %60, %63 : vector<32x128xf32>
    %65 = arith.addf %26, %64 : vector<32x128xf32>
    %cst_34 = arith.constant 0.000000e+00 : f32
    %66 = vector.broadcast %cst_34 : f32 to vector<32x128xf32>
    %67 = arith.maximumf %65, %66 : vector<32x128xf32>
    %cst_35 = arith.constant 0.000000e+00 : f32
    %68 = vector.broadcast %cst_35 : f32 to vector<32x1xf32>
    %69 = vector.extract_strided_slice %67 {offsets = [0, 0], sizes = [32, 127], strides = [1, 1]} : vector<32x128xf32> to vector<32x127xf32>
    %70 = tpu.concatenate %68, %69 in 1 : vector<32x1xf32>, vector<32x127xf32> -> vector<32x128xf32>
    %cst_36 = arith.constant 0.000000e+00 : f32
    %71 = vector.broadcast %cst_36 : f32 to vector<32x128xf32>
    %72 = arith.select %19, %70, %71 : vector<32x128xi1>, vector<32x128xf32>
    %73 = vector.extract_strided_slice %67 {offsets = [0, 1], sizes = [32, 127], strides = [1, 1]} : vector<32x128xf32> to vector<32x127xf32>
    %74 = tpu.concatenate %73, %68 in 1 : vector<32x127xf32>, vector<32x1xf32> -> vector<32x128xf32>
    %cst_37 = arith.constant 0.000000e+00 : f32
    %75 = vector.broadcast %cst_37 : f32 to vector<32x128xf32>
    %76 = arith.select %21, %74, %75 : vector<32x128xi1>, vector<32x128xf32>
    %77 = tpu.concatenate %72, %67, %76 in 0 : vector<32x128xf32>, vector<32x128xf32>, vector<32x128xf32> -> vector<96x128xf32>
    %c1_38 = arith.constant 1 : index
    %c0_39 = arith.constant 0 : index
    %c0_40 = arith.constant 0 : index
    %c0_41 = arith.constant 0 : index
    %78 = vector.load %arg4[%c1_38, %c0_39, %c0_40, %c0_41] : memref<2x2x32x96xf32, #tpu.memory_space<vmem>>, vector<1x1x32x96xf32>
    %79 = vector.shape_cast %78 : vector<1x1x32x96xf32> to vector<32x96xf32>
    %cst_42 = arith.constant dense<0.000000e+00> : vector<32x128xf32>
    %80 = tpu.matmul %79, %77, %cst_42 {dimension_numbers = #tpu.dot_dimension_numbers<[1], [0], [0], [1], [0, 0, 1, 1], [], []>} : vector<32x96xf32>, vector<96x128xf32>, vector<32x128xf32> -> vector<32x128xf32>
    %c1_43 = arith.constant 1 : index
    %c0_44 = arith.constant 0 : index
    %c0_45 = arith.constant 0 : index
    %c0_46 = arith.constant 0 : index
    %81 = vector.load %arg5[%c1_43, %c0_44, %c0_45, %c0_46] : memref<2x2x32x1xf32, #tpu.memory_space<vmem>>, vector<1x1x32x1xf32>
    %82 = vector.shape_cast %81 : vector<1x1x32x1xf32> to vector<32x1xf32>
    %83 = vector.broadcast %82 : vector<32x1xf32> to vector<32x128xf32>
    %84 = arith.addf %80, %83 : vector<32x128xf32>
    %cst_47 = arith.constant 0.000000e+00 : f32
    %85 = vector.broadcast %cst_47 : f32 to vector<32x128xf32>
    %86 = arith.maximumf %84, %85 : vector<32x128xf32>
    %cst_48 = arith.constant 0.000000e+00 : f32
    %87 = vector.broadcast %cst_48 : f32 to vector<32x1xf32>
    %88 = vector.extract_strided_slice %86 {offsets = [0, 0], sizes = [32, 127], strides = [1, 1]} : vector<32x128xf32> to vector<32x127xf32>
    %89 = tpu.concatenate %87, %88 in 1 : vector<32x1xf32>, vector<32x127xf32> -> vector<32x128xf32>
    %cst_49 = arith.constant 0.000000e+00 : f32
    %90 = vector.broadcast %cst_49 : f32 to vector<32x128xf32>
    %91 = arith.select %19, %89, %90 : vector<32x128xi1>, vector<32x128xf32>
    %92 = vector.extract_strided_slice %86 {offsets = [0, 1], sizes = [32, 127], strides = [1, 1]} : vector<32x128xf32> to vector<32x127xf32>
    %93 = tpu.concatenate %92, %87 in 1 : vector<32x127xf32>, vector<32x1xf32> -> vector<32x128xf32>
    %cst_50 = arith.constant 0.000000e+00 : f32
    %94 = vector.broadcast %cst_50 : f32 to vector<32x128xf32>
    %95 = arith.select %21, %93, %94 : vector<32x128xi1>, vector<32x128xf32>
    %96 = tpu.concatenate %91, %86, %95 in 0 : vector<32x128xf32>, vector<32x128xf32>, vector<32x128xf32> -> vector<96x128xf32>
    %c1_51 = arith.constant 1 : index
    %c1_52 = arith.constant 1 : index
    %c0_53 = arith.constant 0 : index
    %c0_54 = arith.constant 0 : index
    %97 = vector.load %arg4[%c1_51, %c1_52, %c0_53, %c0_54] : memref<2x2x32x96xf32, #tpu.memory_space<vmem>>, vector<1x1x32x96xf32>
    %98 = vector.shape_cast %97 : vector<1x1x32x96xf32> to vector<32x96xf32>
    %cst_55 = arith.constant dense<0.000000e+00> : vector<32x128xf32>
    %99 = tpu.matmul %98, %96, %cst_55 {dimension_numbers = #tpu.dot_dimension_numbers<[1], [0], [0], [1], [0, 0, 1, 1], [], []>} : vector<32x96xf32>, vector<96x128xf32>, vector<32x128xf32> -> vector<32x128xf32>
    %c1_56 = arith.constant 1 : index
    %c1_57 = arith.constant 1 : index
    %c0_58 = arith.constant 0 : index
    %c0_59 = arith.constant 0 : index
    %100 = vector.load %arg5[%c1_56, %c1_57, %c0_58, %c0_59] : memref<2x2x32x1xf32, #tpu.memory_space<vmem>>, vector<1x1x32x1xf32>
    %101 = vector.shape_cast %100 : vector<1x1x32x1xf32> to vector<32x1xf32>
    %102 = vector.broadcast %101 : vector<32x1xf32> to vector<32x128xf32>
    %103 = arith.addf %99, %102 : vector<32x128xf32>
    %104 = arith.addf %65, %103 : vector<32x128xf32>
    %c0_60 = arith.constant 0 : index
    %c0_61 = arith.constant 0 : index
    %105 = vector.load %arg6[%c0_60, %c0_61] : memref<4x32xf32, #tpu.memory_space<vmem>>, vector<4x32xf32>
    %cst_62 = arith.constant dense<0.000000e+00> : vector<4x128xf32>
    %106 = tpu.matmul %105, %104, %cst_62 {dimension_numbers = #tpu.dot_dimension_numbers<[1], [0], [0], [1], [0, 0, 1, 1], [], []>} : vector<4x32xf32>, vector<32x128xf32>, vector<4x128xf32> -> vector<4x128xf32>
    %c0_63 = arith.constant 0 : index
    %c0_64 = arith.constant 0 : index
    %107 = vector.load %arg7[%c0_63, %c0_64] : memref<4x1xf32, #tpu.memory_space<vmem>>, vector<4x1xf32>
    %108 = vector.broadcast %107 : vector<4x1xf32> to vector<4x128xf32>
    %109 = arith.addf %106, %108 : vector<4x128xf32>
    %c0_65 = arith.constant 0 : index
    %c0_66 = arith.constant 0 : index
    %110 = vector.load %arg8[%c0_65, %c0_66] : memref<4x128xf32, #tpu.memory_space<vmem>>, vector<4x128xf32>
    tpu.vector_store %arg8[%c0_65, %c0_66], %109 {strides = array<i32>} : memref<4x128xf32, #tpu.memory_space<vmem>>, vector<4x128xf32>,
    return
  }
  func.func @transform_0(%arg0: i32) -> (i32, i32) {
    %c0_i32 = arith.constant 0 : i32
    %c0_i32_0 = arith.constant 0 : i32
    return %c0_i32, %arg0 : i32, i32
  }
  func.func @transform_1(%arg0: i32) -> (i32, i32) {
    %c0_i32 = arith.constant 0 : i32
    %c0_i32_0 = arith.constant 0 : i32
    %c0_i32_1 = arith.constant 0 : i32
    return %c0_i32, %c0_i32_0 : i32, i32
  }
  func.func @transform_2(%arg0: i32) -> (i32, i32) {
    %c0_i32 = arith.constant 0 : i32
    %c0_i32_0 = arith.constant 0 : i32
    %c0_i32_1 = arith.constant 0 : i32
    return %c0_i32, %c0_i32_0 : i32, i32
  }
  func.func @transform_3(%arg0: i32) -> (i32, i32, i32, i32) {
    %c0_i32 = arith.constant 0 : i32
    %c0_i32_0 = arith.constant 0 : i32
    %c0_i32_1 = arith.constant 0 : i32
    %c0_i32_2 = arith.constant 0 : i32
    %c0_i32_3 = arith.constant 0 : i32
    return %c0_i32, %c0_i32_0, %c0_i32_1, %c0_i32_2 : i32, i32, i32, i32
  }
  func.func @transform_4(%arg0: i32) -> (i32, i32, i32, i32) {
    %c0_i32 = arith.constant 0 : i32
    %c0_i32_0 = arith.constant 0 : i32
    %c0_i32_1 = arith.constant 0 : i32
    %c0_i32_2 = arith.constant 0 : i32
    %c0_i32_3 = arith.constant 0 : i32
    return %c0_i32, %c0_i32_0, %c0_i32_1, %c0_i32_2 : i32, i32, i32, i32
  }
  func.func @transform_5(%arg0: i32) -> (i32, i32) {
    %c0_i32 = arith.constant 0 : i32
    %c0_i32_0 = arith.constant 0 : i32
    %c0_i32_1 = arith.constant 0 : i32
    return %c0_i32, %c0_i32_0 : i32, i32
  }
  func.func @transform_6(%arg0: i32) -> (i32, i32) {
    %c0_i32 = arith.constant 0 : i32
    %c0_i32_0 = arith.constant 0 : i32
    %c0_i32_1 = arith.constant 0 : i32
    return %c0_i32, %c0_i32_0 : i32, i32
  }
  func.func @transform_7(%arg0: i32) -> (i32, i32) {
    %c0_i32 = arith.constant 0 : i32
    %c0_i32_0 = arith.constant 0 : i32
    return %c0_i32, %arg0 : i32, i32
  }
}

</mosaic_0001>

<llo_original>
// kernel: tpu_custom_call.1
$region0: #{tpu_custom_call.1}
  #allocation0 [shape = 'u32[]', space=smem, size = 0x4, offset = 0x4, fixed_abs, tag = 'smem constant byte address 0x4 - core index']
  #allocation1 [shape = 'u32[144,128]{1,0:T(1,128)}', space=vmem, size = 0x12000, scoped, tag = 'internal scratch']
  %s0 = inlined_call_operand.vmem [shape: f32[4,256], index: 0, kind: input, shape index: {}]
  %s1 = inlined_call_operand.vmem [shape: f32[32,4], index: 1, kind: input, shape index: {}]
  %s2 = inlined_call_operand.vmem [shape: f32[32,1], index: 2, kind: input, shape index: {}]
  %s3 = inlined_call_operand.vmem [shape: f32[2,2,32,96], index: 3, kind: input, shape index: {}]
  %s4 = inlined_call_operand.vmem [shape: f32[2,2,32,1], index: 4, kind: input, shape index: {}]
  %s5 = inlined_call_operand.vmem [shape: f32[4,32], index: 5, kind: input, shape index: {}]
  %s6 = inlined_call_operand.vmem [shape: f32[4,1], index: 6, kind: input, shape index: {}]
  %s7 = inlined_call_operand.hbm [shape: f32[4,256], index: 7, kind: output, shape index: {}]
  %s8 = sld [smem:[#allocation0]]
  $region61: #{tpu_custom_call.1} parent=0
    _
  %s10 = ssub.s32 1, %s8
  %s11 = scalar_select 0, %s10, %s8
  $region1: #{tpu_custom_call.1} parent=0
    #allocation2 [shape = 'u8[4096]{0}', space=vmem, size = 0x1000, scoped, tag = 'output window, operand 0']
    #allocation3 [shape = 's32[2]{0}', space=sflag, size = 0x8, scoped, tag = 'scoped memory for tpu_custom_call.1']
    %12 = vsyncpa [#allocation3], 0
    %s13 = scalar_lea.sflag [#allocation3], 1
    %14 = vsyncpa %s13, 0
    loop: start=0, step=1, limit=4
    $region2: #{tpu_custom_call.1} parent=1 // loop_pre_header
      _
    $region3: #{tpu_custom_call.1} parent=1 // loop_header
      %s16 = sphi 0, %s20
      %p17 = scmp.ge.s32.totalorder %s16, 4
      %s26 = sphi 0, %s28
      %s29 = sphi 0, %s26
      %s30 = sphi 0, %s29
      %s46 = sphi 0, %s30
      %s50 = sphi 0, %s50
      %s52 = sphi 0, %s50
      %s53 = sphi 0, %s52
      %s67 = sphi 0, %s53
      %s71 = sphi 0, %s71
      %s73 = sphi 0, %s71
      %s74 = sphi 0, %s73
      %s88 = sphi 0, %s74
      %s92 = sphi 0, %s92
      %s94 = sphi 0, %s92
      %s95 = sphi 0, %s94
      %s109 = sphi 0, %s95
      %s113 = sphi 0, %s113
      %s115 = sphi 0, %s113
      %s116 = sphi 0, %s115
      %s130 = sphi 0, %s116
      %s134 = sphi 0, %s134
      %s136 = sphi 0, %s134
      %s137 = sphi 0, %s136
      %s151 = sphi 0, %s137
      %s155 = sphi 0, %s155
      %s157 = sphi 0, %s155
      %s158 = sphi 0, %s157
      %s172 = sphi 0, %s158
      %s178 = sphi 0, %s180
      %s181 = sphi 0, %s178
      %s182 = sphi 0, %s181
      %s198 = sphi 0, %s182
    $region4: #{tpu_custom_call.1} parent=1 // loop_header_branch
      %19 = sbr.rel (%p17) target = $region8
    $region5: #{tpu_custom_call.1} parent=1 // loop_body
      %s21 = ssub.s32 %s16, 1
      %s22 = ssub.s32 %s16, 2
      %s23 = sadd.s32 %s16, 1
      %s24 = ssub.s32 %s16, %s23
      %p25 = scmp.eq.s32.totalorder %s24, 0
      %s27 = sadd.s32 %s26, 1
      %s28 = scalar_select %p25, %s26, %s27
      %p31 = pneg %p25
      %p32 = scmp.eq.s32.totalorder %s16, 1
      %p33 = por %p31, %p32
      %p34 = scmp.ne.s32.totalorder %s26, %s29
      %p35 = scmp.eq.s32.totalorder %s16, 0
      %p36 = por %p34, %p35
      %p37 = scmp.ne.s32.totalorder %s26, %s29
      %p38 = scmp.eq.s32.totalorder %s21, 1
      %p39 = por %p37, %p38
      %p40 = scmp.ne.s32.totalorder %s29, %s30
      %p41 = scmp.eq.s32.totalorder %s21, 0
      %p42 = por %p40, %p41
      %p43 = scmp.ne.s32.totalorder %s29, %s30
      %p44 = scmp.eq.s32.totalorder %s22, 1
      %p45 = por %p43, %p44
      %p47 = scmp.ne.s32.totalorder %s30, %s46
      %p48 = scmp.eq.s32.totalorder %s22, 0
      %p49 = por %p47, %p48
      %s51 = sadd.s32 %s50, 1
      %p54 = scmp.eq.s32.totalorder %s16, 1
      %p55 = scmp.ne.s32.totalorder %s50, %s52
      %p56 = scmp.eq.s32.totalorder %s16, 0
      %p57 = por %p55, %p56
      %p58 = scmp.ne.s32.totalorder %s50, %s52
      %p59 = scmp.eq.s32.totalorder %s21, 1
      %p60 = por %p58, %p59
      %p61 = scmp.ne.s32.totalorder %s52, %s53
      %p62 = scmp.eq.s32.totalorder %s21, 0
      %p63 = por %p61, %p62
      %p64 = scmp.ne.s32.totalorder %s52, %s53
      %p65 = scmp.eq.s32.totalorder %s22, 1
      %p66 = por %p64, %p65
      %p68 = scmp.ne.s32.totalorder %s53, %s67
      %p69 = scmp.eq.s32.totalorder %s22, 0
      %p70 = por %p68, %p69
      %s72 = sadd.s32 %s71, 1
      %p75 = scmp.eq.s32.totalorder %s16, 1
      %p76 = scmp.ne.s32.totalorder %s71, %s73
      %p77 = scmp.eq.s32.totalorder %s16, 0
      %p78 = por %p76, %p77
      %p79 = scmp.ne.s32.totalorder %s71, %s73
      %p80 = scmp.eq.s32.totalorder %s21, 1
      %p81 = por %p79, %p80
      %p82 = scmp.ne.s32.totalorder %s73, %s74
      %p83 = scmp.eq.s32.totalorder %s21, 0
      %p84 = por %p82, %p83
      %p85 = scmp.ne.s32.totalorder %s73, %s74
      %p86 = scmp.eq.s32.totalorder %s22, 1
      %p87 = por %p85, %p86
      %p89 = scmp.ne.s32.totalorder %s74, %s88
      %p90 = scmp.eq.s32.totalorder %s22, 0
      %p91 = por %p89, %p90
      %s93 = sadd.s32 %s92, 1
      %p96 = scmp.eq.s32.totalorder %s16, 1
      %p97 = scmp.ne.s32.totalorder %s92, %s94
      %p98 = scmp.eq.s32.totalorder %s16, 0
      %p99 = por %p97, %p98
      %p100 = scmp.ne.s32.totalorder %s92, %s94
      %p101 = scmp.eq.s32.totalorder %s21, 1
      %p102 = por %p100, %p101
      %p103 = scmp.ne.s32.totalorder %s94, %s95
      %p104 = scmp.eq.s32.totalorder %s21, 0
      %p105 = por %p103, %p104
      %p106 = scmp.ne.s32.totalorder %s94, %s95
      %p107 = scmp.eq.s32.totalorder %s22, 1
      %p108 = por %p106, %p107
      %p110 = scmp.ne.s32.totalorder %s95, %s109
      %p111 = scmp.eq.s32.totalorder %s22, 0
      %p112 = por %p110, %p111
      %s114 = sadd.s32 %s113, 1
      %p117 = scmp.eq.s32.totalorder %s16, 1
      %p118 = scmp.ne.s32.totalorder %s113, %s115
      %p119 = scmp.eq.s32.totalorder %s16, 0
      %p120 = por %p118, %p119
      %p121 = scmp.ne.s32.totalorder %s113, %s115
      %p122 = scmp.eq.s32.totalorder %s21, 1
      %p123 = por %p121, %p122
      %p124 = scmp.ne.s32.totalorder %s115, %s116
      %p125 = scmp.eq.s32.totalorder %s21, 0
      %p126 = por %p124, %p125
      %p127 = scmp.ne.s32.totalorder %s115, %s116
      %p128 = scmp.eq.s32.totalorder %s22, 1
      %p129 = por %p127, %p128
      %p131 = scmp.ne.s32.totalorder %s116, %s130
      %p132 = scmp.eq.s32.totalorder %s22, 0
      %p133 = por %p131, %p132
      %s135 = sadd.s32 %s134, 1
      %p138 = scmp.eq.s32.totalorder %s16, 1
      %p139 = scmp.ne.s32.totalorder %s134, %s136
      %p140 = scmp.eq.s32.totalorder %s16, 0
      %p141 = por %p139, %p140
      %p142 = scmp.ne.s32.totalorder %s134, %s136
      %p143 = scmp.eq.s32.totalorder %s21, 1
      %p144 = por %p142, %p143
      %p145 = scmp.ne.s32.totalorder %s136, %s137
      %p146 = scmp.eq.s32.totalorder %s21, 0
      %p147 = por %p145, %p146
      %p148 = scmp.ne.s32.totalorder %s136, %s137
      %p149 = scmp.eq.s32.totalorder %s22, 1
      %p150 = por %p148, %p149
      %p152 = scmp.ne.s32.totalorder %s137, %s151
      %p153 = scmp.eq.s32.totalorder %s22, 0
      %p154 = por %p152, %p153
      %s156 = sadd.s32 %s155, 1
      %p159 = scmp.eq.s32.totalorder %s16, 1
      %p160 = scmp.ne.s32.totalorder %s155, %s157
      %p161 = scmp.eq.s32.totalorder %s16, 0
      %p162 = por %p160, %p161
      %p163 = scmp.ne.s32.totalorder %s155, %s157
      %p164 = scmp.eq.s32.totalorder %s21, 1
      %p165 = por %p163, %p164
      %p166 = scmp.ne.s32.totalorder %s157, %s158
      %p167 = scmp.eq.s32.totalorder %s21, 0
      %p168 = por %p166, %p167
      %p169 = scmp.ne.s32.totalorder %s157, %s158
      %p170 = scmp.eq.s32.totalorder %s22, 1
      %p171 = por %p169, %p170
      %p173 = scmp.ne.s32.totalorder %s158, %s172
      %p174 = scmp.eq.s32.totalorder %s22, 0
      %p175 = por %p173, %p174
      %s176 = ssub.s32 %s16, %s23
      %p177 = scmp.eq.s32.totalorder %s176, 0
      %s179 = sadd.s32 %s178, 1
      %s180 = scalar_select %p177, %s178, %s179
      %p183 = pneg %p177
      %p184 = scmp.eq.s32.totalorder %s16, 1
      %p185 = por %p183, %p184
      %p186 = scmp.ne.s32.totalorder %s178, %s181
      %p187 = scmp.eq.s32.totalorder %s16, 0
      %p188 = por %p186, %p187
      %p189 = scmp.ne.s32.totalorder %s178, %s181
      %p190 = scmp.eq.s32.totalorder %s21, 1
      %p191 = por %p189, %p190
      %p192 = scmp.ne.s32.totalorder %s181, %s182
      %p193 = scmp.eq.s32.totalorder %s21, 0
      %p194 = por %p192, %p193
      %p195 = scmp.ne.s32.totalorder %s181, %s182
      %p196 = scmp.eq.s32.totalorder %s22, 1
      %p197 = por %p195, %p196
      %p199 = scmp.ne.s32.totalorder %s182, %s198
      %p200 = scmp.eq.s32.totalorder %s22, 0
      %p201 = por %p199, %p200
      %p202 = scmp.le.s32.totalorder 1, %s16
      %p203 = scmp.lt.s32.totalorder %s16, 3
      %p204 = pnand %p202, %p203
      %p205 = pneg %p204
      // Predicated region
      $region9: #{tpu_custom_call.1} parent=5 // pred_check
        _
      $region10: #{tpu_custom_call.1} parent=5 // pred_check_branch
        %207 = sbr.rel (%p204) target = $region12
      $region11: #{tpu_custom_call.1} parent=5 // pred_region
        %s208 = ssub.s32 %s16, 1
        // Predicated region
        $region13: #{tpu_custom_call.1} parent=11 // pred_check
          %p209 = pneg %p63
        $region14: #{tpu_custom_call.1} parent=11 // pred_check_branch
          %211 = sbr.rel (%p209) target = $region16
        $region15: #{tpu_custom_call.1} parent=11 // pred_region
          _
        $region16: #{tpu_custom_call.1} parent=11 // pred_fallthru
          _
        // Predicated region
        $region17: #{tpu_custom_call.1} parent=11 // pred_check
          %p212 = pneg %p84
        $region18: #{tpu_custom_call.1} parent=11 // pred_check_branch
          %214 = sbr.rel (%p212) target = $region20
        $region19: #{tpu_custom_call.1} parent=11 // pred_region
          _
        $region20: #{tpu_custom_call.1} parent=11 // pred_fallthru
          _
        // Predicated region
        $region21: #{tpu_custom_call.1} parent=11 // pred_check
          %p215 = pneg %p105
        $region22: #{tpu_custom_call.1} parent=11 // pred_check_branch
          %217 = sbr.rel (%p215) target = $region24
        $region23: #{tpu_custom_call.1} parent=11 // pred_region
          _
        $region24: #{tpu_custom_call.1} parent=11 // pred_fallthru
          _
        // Predicated region
        $region25: #{tpu_custom_call.1} parent=11 // pred_check
          %p218 = pneg %p126
        $region26: #{tpu_custom_call.1} parent=11 // pred_check_branch
          %220 = sbr.rel (%p218) target = $region28
        $region27: #{tpu_custom_call.1} parent=11 // pred_region
          _
        $region28: #{tpu_custom_call.1} parent=11 // pred_fallthru
          _
        // Predicated region
        $region29: #{tpu_custom_call.1} parent=11 // pred_check
          %p221 = pneg %p147
        $region30: #{tpu_custom_call.1} parent=11 // pred_check_branch
          %223 = sbr.rel (%p221) target = $region32
        $region31: #{tpu_custom_call.1} parent=11 // pred_region
          _
        $region32: #{tpu_custom_call.1} parent=11 // pred_fallthru
          _
        // Predicated region
        $region33: #{tpu_custom_call.1} parent=11 // pred_check
          %p224 = pneg %p168
        $region34: #{tpu_custom_call.1} parent=11 // pred_check_branch
          %226 = sbr.rel (%p224) target = $region36
        $region35: #{tpu_custom_call.1} parent=11 // pred_region
          _
        $region36: #{tpu_custom_call.1} parent=11 // pred_fallthru
          _
      $region12: #{tpu_custom_call.1} parent=5 // pred_fallthru
        _
      %p227 = scmp.lt.s32.totalorder %s16, 2
      // Predicated region
      $region37: #{tpu_custom_call.1} parent=5 // pred_check
        %p228 = pneg %p227
      $region38: #{tpu_custom_call.1} parent=5 // pred_check_branch
        %230 = sbr.rel (%p228) target = $region40
      $region39: #{tpu_custom_call.1} parent=5 // pred_region
        // Predicated region
        $region41: #{tpu_custom_call.1} parent=39 // pred_check
          %p231 = pneg %p36
        $region42: #{tpu_custom_call.1} parent=39 // pred_check_branch
          %233 = sbr.rel (%p231) target = $region44
        $region43: #{tpu_custom_call.1} parent=39 // pred_region
          %p234 = scmp.lt.s32.totalorder %s16, 1
          %s235 = scalar_select %p234, %s16, 1
          %s236 = smul.addr %s235, 4
          %s237 = scalar_lea.vmem %s0, %s236
        $region44: #{tpu_custom_call.1} parent=39 // pred_fallthru
          _
      $region40: #{tpu_custom_call.1} parent=5 // pred_fallthru
        _
      %p238 = scmp.le.s32.totalorder 1, %s16
      %p239 = scmp.lt.s32.totalorder %s16, 3
      %p240 = pnand %p238, %p239
      %p241 = pneg %p240
      // Predicated region
      $region45: #{tpu_custom_call.1} parent=5 // pred_check
        _
      $region46: #{tpu_custom_call.1} parent=5 // pred_check_branch
        %243 = sbr.rel (%p240) target = $region48
      $region47: #{tpu_custom_call.1} parent=5 // pred_region
        %s244 = ssub.s32 %s16, 1
        %p245 = scmp.lt.s32.totalorder %s21, 1
        %s246 = scalar_select %p245, %s21, 1
        %s247 = smul.addr %s246, 4
        %s248 = scalar_lea.vmem %s0, %s247
        %p249 = pneg %p42
        %p250 = pneg %p39
        %p251 = pneg %p63
        %p252 = pneg %p60
        %p253 = pneg %p84
        %p254 = pneg %p81
        %p255 = pneg %p105
        %p256 = pneg %p102
        %p257 = pneg %p126
        %p258 = pneg %p123
        %p259 = pneg %p147
        %p260 = pneg %p144
        %p261 = pneg %p168
        %p262 = pneg %p165
        %p263 = pneg %p194
        %p264 = pneg %p191
        %s265 = sand.u32 %s181, 1
        %s266 = scalar_lea.sflag [#allocation3], %s265
        %s267 = sand.u32 %s181, 1
        %s268 = smul.addr %s267, 4
        %s269 = scalar_lea.vmem [#allocation2], %s268
        %p270 = scmp.lt.s32.totalorder %s21, 1
        %s271 = scalar_select %p270, %s21, 1
        %s272 = smul.addr %s271, 4
        %s273 = scalar_lea.vmem %s0, %s272
        %v274 = vld [vmem:[%s273] sm:$0xf]
        %v275 = vlaneseq
        %v276 = vand.u32 %v275, 127
        %vm277 = vcmp.lt.s32.totalorder %v276, 0
        %v278 = vsub.s32 0, %v276
        %v279 = vsel %vm277, %v278, %v276
        %v280 = vshrl.u32 %v279, 4
        %v281 = vand.u32 %v279, 15
        %v282 = vsub.s32 0, %v281
        %v283 = vsel %vm277, %v282, %v281
        %vm284 = vcmp.ne.s32.totalorder %v283, 0
        %vm285 = vcmp.lt.s32.totalorder %v283, 0
        %vm286 = vmand %vm285, %vm284
        %v287 = vadd.s32 %v283, 16
        %v288 = vsel %vm286, %v287, %v283
        %vm289 = vcmp.ne.s32.totalorder %v288, 0
        %vm290 = vcmp.ne.s32.totalorder %v288, 15
        %v291 = vld [vmem:[%s1] sm:$0xff]
        %v292 = vld [vmem:[%s1 + $0x8] sm:$0xff]
        %v293 = vld [vmem:[%s1 + $0x10] sm:$0xff]
        %v294 = vld [vmem:[%s1 + $0x18] sm:$0xff]
        %v295 = vld [vmem:[%s2] sm:$0xff]
        %v296 = vld [vmem:[%s2 + $0x8] sm:$0xff]
        %v297 = vld [vmem:[%s2 + $0x10] sm:$0xff]
        %v298 = vld [vmem:[%s2 + $0x18] sm:$0xff]
        %300 = vset.pattern.permute.xlu0 0
        %301 = vperm.xlu0 %300, %v295
        %v302 = vpop.permute.xlu0 %301
        %305 = vset.pattern.permute.xlu0 0
        %306 = vperm.xlu0 %305, %v296
        %v307 = vpop.permute.xlu0 %306
        %310 = vset.pattern.permute.xlu0 0
        %311 = vperm.xlu0 %310, %v297
        %v312 = vpop.permute.xlu0 %311
        %315 = vset.pattern.permute.xlu0 0
        %316 = vperm.xlu0 %315, %v298
        %v317 = vpop.permute.xlu0 %316
        %vm319 = vcmask 31744
        %v321 = vsel %vm319, %v291, 0
        %v324 = vsel %vm319, %v292, 0
        %v327 = vsel %vm319, %v293, 0
        %v330 = vsel %vm319, %v294, 0
        %vm332 = vcmask 1043456
        %v334 = vsel %vm332, %v274, 0
        %336 = vmatprep.subr.mxu0 0.0
        %337 = vmatpush1.msra.mxu0 0.0
        %338 = vmatprep.subr.mxu0 0.0
        %339 = vmatpush1.msra.mxu0 0.0
        %340 = vmatprep.subr.mxu0 0.0
        %341 = vmatpush1.msra.mxu0 0.0
        %342 = vmatprep.subr.mxu0 0.0
        %343 = vmatpush1.msra.mxu0 0.0
        %344 = vmatprep.subr.mxu0 0.0
        %345 = vmatpush1.msra.mxu0 0.0
        %346 = vmatprep.subr.mxu0 0.0
        %347 = vmatpush1.msra.mxu0 0.0
        %348 = vmatprep.subr.mxu0 0.0
        %349 = vmatpush1.msra.mxu0 0.0
        %350 = vmatprep.subr.mxu0 0.0
        %351 = vmatpush1.msra.mxu0 0.0
        %352 = vmatprep.subr.mxu0 0.0
        %353 = vmatpush1.msra.mxu0 0.0
        %354 = vmatprep.subr.mxu0 0.0
        %355 = vmatpush1.msra.mxu0 0.0
        %356 = vmatprep.subr.mxu0 0.0
        %357 = vmatpush1.msra.mxu0 0.0
        %358 = vmatprep.subr.mxu0 0.0
        %359 = vmatpush1.msra.mxu0 0.0
        %360 = vmatprep.subr.mxu0 0.0
        %361 = vmatpush1.msra.mxu0 0.0
        %362 = vmatprep.subr.mxu0 0.0
        %363 = vmatpush1.msra.mxu0 0.0
        %364 = vmatprep.subr.mxu0 0.0
        %365 = vmatpush1.msra.mxu0 0.0
        %366 = vmatprep.subr.mxu0 0.0
        %367 = vmatpush1.msra.mxu0 %v334
        %368 = vmatprep.subr.mxu0 0.0
        %369 = vmatpush2.msra.mxu0 0.0
        %370 = vmatprep.subr.mxu0 0.0
        %371 = vmatpush2.msra.mxu0 0.0
        %372 = vmatprep.subr.mxu0 0.0
        %373 = vmatpush2.msra.mxu0 0.0
        %374 = vmatprep.subr.mxu0 0.0
        %375 = vmatpush2.msra.mxu0 0.0
        %376 = vmatprep.subr.mxu0 0.0
        %377 = vmatpush2.msra.mxu0 0.0
        %378 = vmatprep.subr.mxu0 0.0
        %379 = vmatpush2.msra.mxu0 0.0
        %380 = vmatprep.subr.mxu0 0.0
        %381 = vmatpush2.msra.mxu0 0.0
        %382 = vmatprep.subr.mxu0 0.0
        %383 = vmatpush2.msra.mxu0 0.0
        %384 = vmatprep.subr.mxu0 0.0
        %385 = vmatpush2.msra.mxu0 0.0
        %386 = vmatprep.subr.mxu0 0.0
        %387 = vmatpush2.msra.mxu0 0.0
        %388 = vmatprep.subr.mxu0 0.0
        %389 = vmatpush2.msra.mxu0 0.0
        %390 = vmatprep.subr.mxu0 0.0
        %391 = vmatpush2.msra.mxu0 0.0
        %392 = vmatprep.subr.mxu0 0.0
        %393 = vmatpush2.msra.mxu0 0.0
        %394 = vmatprep.subr.mxu0 0.0
        %395 = vmatpush2.msra.mxu0 0.0
        %396 = vmatprep.subr.mxu0 0.0
        %397 = vmatpush2.msra.mxu0 0.0
        %398 = vmatprep.subr.mxu0 0.0
        %399 = vmatpush2.msra.mxu0 0.0
        %400 = vmatprep.mubr.f32.mxu0 0.0
        %401 = vmatmul.mubr.f32.gmra.mxu0 %v321
        %v402 = vpop.f32.mrf.mxu0
        %v403 = vadd.f32 %v302, %v402
        %v404 = vpop.f32.mrf.mxu0
        %405 = vmatprep.mubr.f32.mxu0 0.0
        %406 = vmatmul.mubr.f32.gmra.mxu0 %v324
        %v407 = vpop.f32.mrf.mxu0
        %v408 = vadd.f32 %v307, %v407
        %v409 = vpop.f32.mrf.mxu0
        %410 = vmatprep.mubr.f32.mxu0 0.0
        %411 = vmatmul.mubr.f32.gmra.mxu0 %v327
        %v412 = vpop.f32.mrf.mxu0
        %v413 = vadd.f32 %v312, %v412
        %v414 = vpop.f32.mrf.mxu0
        %415 = vmatprep.mubr.f32.mxu0 0.0
        %416 = vmatmul.mubr.f32.gmra.mxu0 %v330
        %v417 = vpop.f32.mrf.mxu0
        %v418 = vadd.f32 %v317, %v417
        %v419 = vpop.f32.mrf.mxu0
        %420 = vdwg.mxu0
        %v421 = vmax.f32 %v403, 0.0
        %v422 = vmax.f32 %v408, 0.0
        %v423 = vmax.f32 %v413, 0.0
        %v424 = vmax.f32 %v418, 0.0
        %429 = vrot.lane.b32.xlu0 %v421, 1
        %v430 = vpop.permute.xlu0 %429
        %431 = vrot.lane.b32.xlu0 %v422, 1
        %v432 = vpop.permute.xlu0 %431
        %433 = vrot.lane.b32.xlu0 %v423, 1
        %v434 = vpop.permute.xlu0 %433
        %435 = vrot.lane.b32.xlu0 %v424, 1
        %v436 = vpop.permute.xlu0 %435
        %vm441 = vcmask 7168
        %v442 = vsel %vm441, 0.0, %v430
        %v443 = vsel %vm441, 0.0, %v432
        %v444 = vsel %vm441, 0.0, %v434
        %v445 = vsel %vm441, 0.0, %v436
        %v446 = vsel %vm289, %v442, 0.0
        %v447 = vsel %vm289, %v443, 0.0
        %v448 = vsel %vm289, %v444, 0.0
        %v449 = vsel %vm289, %v445, 0.0
        %450 = vrot.lane.b32.xlu0 %v421, 127
        %v451 = vpop.permute.xlu0 %450
        %452 = vrot.lane.b32.xlu0 %v422, 127
        %v453 = vpop.permute.xlu0 %452
        %454 = vrot.lane.b32.xlu0 %v423, 127
        %v455 = vpop.permute.xlu0 %454
        %456 = vrot.lane.b32.xlu0 %v424, 127
        %v457 = vpop.permute.xlu0 %456
        %vm462 = vcmask 1039360
        %v463 = vsel %vm462, %v451, 0.0
        %v464 = vsel %vm462, %v453, 0.0
        %v465 = vsel %vm462, %v455, 0.0
        %v466 = vsel %vm462, %v457, 0.0
        %v467 = vsel %vm290, %v463, 0.0
        %v468 = vsel %vm290, %v464, 0.0
        %v469 = vsel %vm290, %v465, 0.0
        %v470 = vsel %vm290, %v466, 0.0
        %v471 = vld [vmem:[%s3] sm:$0xff]
        %v472 = vld [vmem:[%s3 + $0x8] sm:$0xff]
        %v473 = vld [vmem:[%s3 + $0x10] sm:$0xff]
        %v474 = vld [vmem:[%s3 + $0x18] sm:$0xff]
        %v475 = vld [vmem:[%s4] sm:$0xff]
        %v476 = vld [vmem:[%s4 + $0x8] sm:$0xff]
        %v477 = vld [vmem:[%s4 + $0x10] sm:$0xff]
        %v478 = vld [vmem:[%s4 + $0x18] sm:$0xff]
        %480 = vset.pattern.permute.xlu0 0
        %481 = vperm.xlu0 %480, %v475
        %v482 = vpop.permute.xlu0 %481
        %485 = vset.pattern.permute.xlu0 0
        %486 = vperm.xlu0 %485, %v476
        %v487 = vpop.permute.xlu0 %486
        %490 = vset.pattern.permute.xlu0 0
        %491 = vperm.xlu0 %490, %v477
        %v492 = vpop.permute.xlu0 %491
        %495 = vset.pattern.permute.xlu0 0
        %496 = vperm.xlu0 %495, %v478
        %v497 = vpop.permute.xlu0 %496
        %vm499 = vcmask 785408
        %v501 = vsel %vm499, %v471, 0
        %v504 = vsel %vm499, %v472, 0
        %v507 = vsel %vm499, %v473, 0
        %v510 = vsel %vm499, %v474, 0
        %512 = vmatprep.subr.mxu0 0.0
        %513 = vmatpush1.msra.mxu0 0.0
        %514 = vmatprep.subr.mxu0 0.0
        %515 = vmatpush1.msra.mxu0 0.0
        %516 = vmatprep.subr.mxu0 0.0
        %517 = vmatpush1.msra.mxu0 0.0
        %518 = vmatprep.subr.mxu0 0.0
        %519 = vmatpush1.msra.mxu0 0.0
        %520 = vmatprep.subr.mxu0 0.0
        %521 = vmatpush1.msra.mxu0 %v470
        %522 = vmatprep.subr.mxu0 0.0
        %523 = vmatpush1.msra.mxu0 %v469
        %524 = vmatprep.subr.mxu0 0.0
        %525 = vmatpush1.msra.mxu0 %v468
        %526 = vmatprep.subr.mxu0 0.0
        %527 = vmatpush1.msra.mxu0 %v467
        %528 = vmatprep.subr.mxu0 0.0
        %529 = vmatpush1.msra.mxu0 %v424
        %530 = vmatprep.subr.mxu0 0.0
        %531 = vmatpush1.msra.mxu0 %v423
        %532 = vmatprep.subr.mxu0 0.0
        %533 = vmatpush1.msra.mxu0 %v422
        %534 = vmatprep.subr.mxu0 0.0
        %535 = vmatpush1.msra.mxu0 %v421
        %536 = vmatprep.subr.mxu0 0.0
        %537 = vmatpush1.msra.mxu0 %v449
        %538 = vmatprep.subr.mxu0 0.0
        %539 = vmatpush1.msra.mxu0 %v448
        %540 = vmatprep.subr.mxu0 0.0
        %541 = vmatpush1.msra.mxu0 %v447
        %542 = vmatprep.subr.mxu0 0.0
        %543 = vmatpush1.msra.mxu0 %v446
        %544 = vmatprep.subr.mxu0 0.0
        %545 = vmatpush2.msra.mxu0 0.0
        %546 = vmatprep.subr.mxu0 0.0
        %547 = vmatpush2.msra.mxu0 0.0
        %548 = vmatprep.subr.mxu0 0.0
        %549 = vmatpush2.msra.mxu0 0.0
        %550 = vmatprep.subr.mxu0 0.0
        %551 = vmatpush2.msra.mxu0 0.0
        %552 = vmatprep.subr.mxu0 0.0
        %553 = vmatpush2.msra.mxu0 0.0
        %554 = vmatprep.subr.mxu0 0.0
        %555 = vmatpush2.msra.mxu0 0.0
        %556 = vmatprep.subr.mxu0 0.0
        %557 = vmatpush2.msra.mxu0 0.0
        %558 = vmatprep.subr.mxu0 0.0
        %559 = vmatpush2.msra.mxu0 0.0
        %560 = vmatprep.subr.mxu0 0.0
        %561 = vmatpush2.msra.mxu0 0.0
        %562 = vmatprep.subr.mxu0 0.0
        %563 = vmatpush2.msra.mxu0 0.0
        %564 = vmatprep.subr.mxu0 0.0
        %565 = vmatpush2.msra.mxu0 0.0
        %566 = vmatprep.subr.mxu0 0.0
        %567 = vmatpush2.msra.mxu0 0.0
        %568 = vmatprep.subr.mxu0 0.0
        %569 = vmatpush2.msra.mxu0 0.0
        %570 = vmatprep.subr.mxu0 0.0
        %571 = vmatpush2.msra.mxu0 0.0
        %572 = vmatprep.subr.mxu0 0.0
        %573 = vmatpush2.msra.mxu0 0.0
        %574 = vmatprep.subr.mxu0 0.0
        %575 = vmatpush2.msra.mxu0 0.0
        %576 = vmatprep.mubr.f32.mxu0 0.0
        %577 = vmatmul.mubr.f32.gmra.mxu0 %v501
        %v578 = vpop.f32.mrf.mxu0
        %v579 = vadd.f32 %v482, %v578
        %v580 = vpop.f32.mrf.mxu0
        %581 = vmatprep.mubr.f32.mxu0 0.0
        %582 = vmatmul.mubr.f32.gmra.mxu0 %v504
        %v583 = vpop.f32.mrf.mxu0
        %v584 = vadd.f32 %v487, %v583
        %v585 = vpop.f32.mrf.mxu0
        %586 = vmatprep.mubr.f32.mxu0 0.0
        %587 = vmatmul.mubr.f32.gmra.mxu0 %v507
        %v588 = vpop.f32.mrf.mxu0
        %v589 = vadd.f32 %v492, %v588
        %v590 = vpop.f32.mrf.mxu0
        %591 = vmatprep.mubr.f32.mxu0 0.0
        %592 = vmatmul.mubr.f32.gmra.mxu0 %v510
        %v593 = vpop.f32.mrf.mxu0
        %v594 = vadd.f32 %v497, %v593
        %v595 = vpop.f32.mrf.mxu0
        %596 = vdwg.mxu0
        %v597 = vmax.f32 %v579, 0.0
        %v598 = vmax.f32 %v584, 0.0
        %v599 = vmax.f32 %v589, 0.0
        %v600 = vmax.f32 %v594, 0.0
        %605 = vrot.lane.b32.xlu0 %v597, 1
        %v606 = vpop.permute.xlu0 %605
        %607 = vrot.lane.b32.xlu0 %v598, 1
        %v608 = vpop.permute.xlu0 %607
        %609 = vrot.lane.b32.xlu0 %v599, 1
        %v610 = vpop.permute.xlu0 %609
        %611 = vrot.lane.b32.xlu0 %v600, 1
        %v612 = vpop.permute.xlu0 %611
        %v617 = vsel %vm441, 0.0, %v606
        %v618 = vsel %vm441, 0.0, %v608
        %v619 = vsel %vm441, 0.0, %v610
        %v620 = vsel %vm441, 0.0, %v612
        %v621 = vsel %vm289, %v617, 0.0
        %v622 = vsel %vm289, %v618, 0.0
        %v623 = vsel %vm289, %v619, 0.0
        %v624 = vsel %vm289, %v620, 0.0
        %625 = vrot.lane.b32.xlu0 %v597, 127
        %v626 = vpop.permute.xlu0 %625
        %627 = vrot.lane.b32.xlu0 %v598, 127
        %v628 = vpop.permute.xlu0 %627
        %629 = vrot.lane.b32.xlu0 %v599, 127
        %v630 = vpop.permute.xlu0 %629
        %631 = vrot.lane.b32.xlu0 %v600, 127
        %v632 = vpop.permute.xlu0 %631
        %v637 = vsel %vm462, %v626, 0.0
        %v638 = vsel %vm462, %v628, 0.0
        %v639 = vsel %vm462, %v630, 0.0
        %v640 = vsel %vm462, %v632, 0.0
        %v641 = vsel %vm290, %v637, 0.0
        %v642 = vsel %vm290, %v638, 0.0
        %v643 = vsel %vm290, %v639, 0.0
        %v644 = vsel %vm290, %v640, 0.0
        %s645 = scalar_lea.vmem %s3, 32
        %v646 = vld [vmem:[%s645] sm:$0xff]
        %v647 = vld [vmem:[%s645 + $0x8] sm:$0xff]
        %v648 = vld [vmem:[%s645 + $0x10] sm:$0xff]
        %v649 = vld [vmem:[%s645 + $0x18] sm:$0xff]
        %s650 = scalar_lea.vmem %s4, 32
        %v651 = vld [vmem:[%s650] sm:$0xff]
        %v652 = vld [vmem:[%s650 + $0x8] sm:$0xff]
        %v653 = vld [vmem:[%s650 + $0x10] sm:$0xff]
        %v654 = vld [vmem:[%s650 + $0x18] sm:$0xff]
        %656 = vset.pattern.permute.xlu0 0
        %657 = vperm.xlu0 %656, %v651
        %v658 = vpop.permute.xlu0 %657
        %661 = vset.pattern.permute.xlu0 0
        %662 = vperm.xlu0 %661, %v652
        %v663 = vpop.permute.xlu0 %662
        %666 = vset.pattern.permute.xlu0 0
        %667 = vperm.xlu0 %666, %v653
        %v668 = vpop.permute.xlu0 %667
        %671 = vset.pattern.permute.xlu0 0
        %672 = vperm.xlu0 %671, %v654
        %v673 = vpop.permute.xlu0 %672
        %v676 = vsel %vm499, %v646, 0
        %v679 = vsel %vm499, %v647, 0
        %v682 = vsel %vm499, %v648, 0
        %v685 = vsel %vm499, %v649, 0
        %687 = vmatprep.subr.mxu0 0.0
        %688 = vmatpush1.msra.mxu0 0.0
        %689 = vmatprep.subr.mxu0 0.0
        %690 = vmatpush1.msra.mxu0 0.0
        %691 = vmatprep.subr.mxu0 0.0
        %692 = vmatpush1.msra.mxu0 0.0
        %693 = vmatprep.subr.mxu0 0.0
        %694 = vmatpush1.msra.mxu0 0.0
        %695 = vmatprep.subr.mxu0 0.0
        %696 = vmatpush1.msra.mxu0 %v644
        %697 = vmatprep.subr.mxu0 0.0
        %698 = vmatpush1.msra.mxu0 %v643
        %699 = vmatprep.subr.mxu0 0.0
        %700 = vmatpush1.msra.mxu0 %v642
        %701 = vmatprep.subr.mxu0 0.0
        %702 = vmatpush1.msra.mxu0 %v641
        %703 = vmatprep.subr.mxu0 0.0
        %704 = vmatpush1.msra.mxu0 %v600
        %705 = vmatprep.subr.mxu0 0.0
        %706 = vmatpush1.msra.mxu0 %v599
        %707 = vmatprep.subr.mxu0 0.0
        %708 = vmatpush1.msra.mxu0 %v598
        %709 = vmatprep.subr.mxu0 0.0
        %710 = vmatpush1.msra.mxu0 %v597
        %711 = vmatprep.subr.mxu0 0.0
        %712 = vmatpush1.msra.mxu0 %v624
        %713 = vmatprep.subr.mxu0 0.0
        %714 = vmatpush1.msra.mxu0 %v623
        %715 = vmatprep.subr.mxu0 0.0
        %716 = vmatpush1.msra.mxu0 %v622
        %717 = vmatprep.subr.mxu0 0.0
        %718 = vmatpush1.msra.mxu0 %v621
        %719 = vmatprep.subr.mxu0 0.0
        %720 = vmatpush2.msra.mxu0 0.0
        %721 = vmatprep.subr.mxu0 0.0
        %722 = vmatpush2.msra.mxu0 0.0
        %723 = vmatprep.subr.mxu0 0.0
        %724 = vmatpush2.msra.mxu0 0.0
        %725 = vmatprep.subr.mxu0 0.0
        %726 = vmatpush2.msra.mxu0 0.0
        %727 = vmatprep.subr.mxu0 0.0
        %728 = vmatpush2.msra.mxu0 0.0
        %729 = vmatprep.subr.mxu0 0.0
        %730 = vmatpush2.msra.mxu0 0.0
        %731 = vmatprep.subr.mxu0 0.0
        %732 = vmatpush2.msra.mxu0 0.0
        %733 = vmatprep.subr.mxu0 0.0
        %734 = vmatpush2.msra.mxu0 0.0
        %735 = vmatprep.subr.mxu0 0.0
        %736 = vmatpush2.msra.mxu0 0.0
        %737 = vmatprep.subr.mxu0 0.0
        %738 = vmatpush2.msra.mxu0 0.0
        %739 = vmatprep.subr.mxu0 0.0
        %740 = vmatpush2.msra.mxu0 0.0
        %741 = vmatprep.subr.mxu0 0.0
        %742 = vmatpush2.msra.mxu0 0.0
        %743 = vmatprep.subr.mxu0 0.0
        %744 = vmatpush2.msra.mxu0 0.0
        %745 = vmatprep.subr.mxu0 0.0
        %746 = vmatpush2.msra.mxu0 0.0
        %747 = vmatprep.subr.mxu0 0.0
        %748 = vmatpush2.msra.mxu0 0.0
        %749 = vmatprep.subr.mxu0 0.0
        %750 = vmatpush2.msra.mxu0 0.0
        %751 = vmatprep.mubr.f32.mxu0 0.0
        %752 = vmatmul.mubr.f32.gmra.mxu0 %v676
        %v753 = vpop.f32.mrf.mxu0
        %v754 = vadd.f32 %v658, %v753
        %v755 = vpop.f32.mrf.mxu0
        %756 = vmatprep.mubr.f32.mxu0 0.0
        %757 = vmatmul.mubr.f32.gmra.mxu0 %v679
        %v758 = vpop.f32.mrf.mxu0
        %v759 = vadd.f32 %v663, %v758
        %v760 = vpop.f32.mrf.mxu0
        %761 = vmatprep.mubr.f32.mxu0 0.0
        %762 = vmatmul.mubr.f32.gmra.mxu0 %v682
        %v763 = vpop.f32.mrf.mxu0
        %v764 = vadd.f32 %v668, %v763
        %v765 = vpop.f32.mrf.mxu0
        %766 = vmatprep.mubr.f32.mxu0 0.0
        %767 = vmatmul.mubr.f32.gmra.mxu0 %v685
        %v768 = vpop.f32.mrf.mxu0
        %v769 = vadd.f32 %v673, %v768
        %v770 = vpop.f32.mrf.mxu0
        %771 = vdwg.mxu0
        %v772 = vadd.f32 %v403, %v754
        %v773 = vadd.f32 %v408, %v759
        %v774 = vadd.f32 %v413, %v764
        %v775 = vadd.f32 %v418, %v769
        %v776 = vmax.f32 %v772, 0.0
        %v777 = vmax.f32 %v773, 0.0
        %v778 = vmax.f32 %v774, 0.0
        %v779 = vmax.f32 %v775, 0.0
        %784 = vrot.lane.b32.xlu0 %v776, 1
        %v785 = vpop.permute.xlu0 %784
        %786 = vrot.lane.b32.xlu0 %v777, 1
        %v787 = vpop.permute.xlu0 %786
        %788 = vrot.lane.b32.xlu0 %v778, 1
        %v789 = vpop.permute.xlu0 %788
        %790 = vrot.lane.b32.xlu0 %v779, 1
        %v791 = vpop.permute.xlu0 %790
        %v796 = vsel %vm441, 0.0, %v785
        %v797 = vsel %vm441, 0.0, %v787
        %v798 = vsel %vm441, 0.0, %v789
        %v799 = vsel %vm441, 0.0, %v791
        %v800 = vsel %vm289, %v796, 0.0
        %v801 = vsel %vm289, %v797, 0.0
        %v802 = vsel %vm289, %v798, 0.0
        %v803 = vsel %vm289, %v799, 0.0
        %804 = vrot.lane.b32.xlu0 %v776, 127
        %v805 = vpop.permute.xlu0 %804
        %806 = vrot.lane.b32.xlu0 %v777, 127
        %v807 = vpop.permute.xlu0 %806
        %808 = vrot.lane.b32.xlu0 %v778, 127
        %v809 = vpop.permute.xlu0 %808
        %810 = vrot.lane.b32.xlu0 %v779, 127
        %v811 = vpop.permute.xlu0 %810
        %v816 = vsel %vm462, %v805, 0.0
        %v817 = vsel %vm462, %v807, 0.0
        %v818 = vsel %vm462, %v809, 0.0
        %v819 = vsel %vm462, %v811, 0.0
        %v820 = vsel %vm290, %v816, 0.0
        %v821 = vsel %vm290, %v817, 0.0
        %v822 = vsel %vm290, %v818, 0.0
        %v823 = vsel %vm290, %v819, 0.0
        %s824 = scalar_lea.vmem %s3, 64
        %v825 = vld [vmem:[%s824] sm:$0xff]
        %v826 = vld [vmem:[%s824 + $0x8] sm:$0xff]
        %v827 = vld [vmem:[%s824 + $0x10] sm:$0xff]
        %v828 = vld [vmem:[%s824 + $0x18] sm:$0xff]
        %s829 = scalar_lea.vmem %s4, 64
        %v830 = vld [vmem:[%s829] sm:$0xff]
        %v831 = vld [vmem:[%s829 + $0x8] sm:$0xff]
        %v832 = vld [vmem:[%s829 + $0x10] sm:$0xff]
        %v833 = vld [vmem:[%s829 + $0x18] sm:$0xff]
        %835 = vset.pattern.permute.xlu0 0
        %836 = vperm.xlu0 %835, %v830
        %v837 = vpop.permute.xlu0 %836
        %840 = vset.pattern.permute.xlu0 0
        %841 = vperm.xlu0 %840, %v831
        %v842 = vpop.permute.xlu0 %841
        %845 = vset.pattern.permute.xlu0 0
        %846 = vperm.xlu0 %845, %v832
        %v847 = vpop.permute.xlu0 %846
        %850 = vset.pattern.permute.xlu0 0
        %851 = vperm.xlu0 %850, %v833
        %v852 = vpop.permute.xlu0 %851
        %v855 = vsel %vm499, %v825, 0
        %v858 = vsel %vm499, %v826, 0
        %v861 = vsel %vm499, %v827, 0
        %v864 = vsel %vm499, %v828, 0
        %866 = vmatprep.subr.mxu0 0.0
        %867 = vmatpush1.msra.mxu0 0.0
        %868 = vmatprep.subr.mxu0 0.0
        %869 = vmatpush1.msra.mxu0 0.0
        %870 = vmatprep.subr.mxu0 0.0
        %871 = vmatpush1.msra.mxu0 0.0
        %872 = vmatprep.subr.mxu0 0.0
        %873 = vmatpush1.msra.mxu0 0.0
        %874 = vmatprep.subr.mxu0 0.0
        %875 = vmatpush1.msra.mxu0 %v823
        %876 = vmatprep.subr.mxu0 0.0
        %877 = vmatpush1.msra.mxu0 %v822
        %878 = vmatprep.subr.mxu0 0.0
        %879 = vmatpush1.msra.mxu0 %v821
        %880 = vmatprep.subr.mxu0 0.0
        %881 = vmatpush1.msra.mxu0 %v820
        %882 = vmatprep.subr.mxu0 0.0
        %883 = vmatpush1.msra.mxu0 %v779
        %884 = vmatprep.subr.mxu0 0.0
        %885 = vmatpush1.msra.mxu0 %v778
        %886 = vmatprep.subr.mxu0 0.0
        %887 = vmatpush1.msra.mxu0 %v777
        %888 = vmatprep.subr.mxu0 0.0
        %889 = vmatpush1.msra.mxu0 %v776
        %890 = vmatprep.subr.mxu0 0.0
        %891 = vmatpush1.msra.mxu0 %v803
        %892 = vmatprep.subr.mxu0 0.0
        %893 = vmatpush1.msra.mxu0 %v802
        %894 = vmatprep.subr.mxu0 0.0
        %895 = vmatpush1.msra.mxu0 %v801
        %896 = vmatprep.subr.mxu0 0.0
        %897 = vmatpush1.msra.mxu0 %v800
        %898 = vmatprep.subr.mxu0 0.0
        %899 = vmatpush2.msra.mxu0 0.0
        %900 = vmatprep.subr.mxu0 0.0
        %901 = vmatpush2.msra.mxu0 0.0
        %902 = vmatprep.subr.mxu0 0.0
        %903 = vmatpush2.msra.mxu0 0.0
        %904 = vmatprep.subr.mxu0 0.0
        %905 = vmatpush2.msra.mxu0 0.0
        %906 = vmatprep.subr.mxu0 0.0
        %907 = vmatpush2.msra.mxu0 0.0
        %908 = vmatprep.subr.mxu0 0.0
        %909 = vmatpush2.msra.mxu0 0.0
        %910 = vmatprep.subr.mxu0 0.0
        %911 = vmatpush2.msra.mxu0 0.0
        %912 = vmatprep.subr.mxu0 0.0
        %913 = vmatpush2.msra.mxu0 0.0
        %914 = vmatprep.subr.mxu0 0.0
        %915 = vmatpush2.msra.mxu0 0.0
        %916 = vmatprep.subr.mxu0 0.0
        %917 = vmatpush2.msra.mxu0 0.0
        %918 = vmatprep.subr.mxu0 0.0
        %919 = vmatpush2.msra.mxu0 0.0
        %920 = vmatprep.subr.mxu0 0.0
        %921 = vmatpush2.msra.mxu0 0.0
        %922 = vmatprep.subr.mxu0 0.0
        %923 = vmatpush2.msra.mxu0 0.0
        %924 = vmatprep.subr.mxu0 0.0
        %925 = vmatpush2.msra.mxu0 0.0
        %926 = vmatprep.subr.mxu0 0.0
        %927 = vmatpush2.msra.mxu0 0.0
        %928 = vmatprep.subr.mxu0 0.0
        %929 = vmatpush2.msra.mxu0 0.0
        %930 = vmatprep.mubr.f32.mxu0 0.0
        %931 = vmatmul.mubr.f32.gmra.mxu0 %v855
        %v932 = vpop.f32.mrf.mxu0
        %v933 = vadd.f32 %v837, %v932
        %v934 = vpop.f32.mrf.mxu0
        %935 = vmatprep.mubr.f32.mxu0 0.0
        %936 = vmatmul.mubr.f32.gmra.mxu0 %v858
        %v937 = vpop.f32.mrf.mxu0
        %v938 = vadd.f32 %v842, %v937
        %v939 = vpop.f32.mrf.mxu0
        %940 = vmatprep.mubr.f32.mxu0 0.0
        %941 = vmatmul.mubr.f32.gmra.mxu0 %v861
        %v942 = vpop.f32.mrf.mxu0
        %v943 = vadd.f32 %v847, %v942
        %v944 = vpop.f32.mrf.mxu0
        %945 = vmatprep.mubr.f32.mxu0 0.0
        %946 = vmatmul.mubr.f32.gmra.mxu0 %v864
        %v947 = vpop.f32.mrf.mxu0
        %v948 = vadd.f32 %v852, %v947
        %v949 = vpop.f32.mrf.mxu0
        %950 = vdwg.mxu0
        %v951 = vmax.f32 %v933, 0.0
        %v952 = vmax.f32 %v938, 0.0
        %v953 = vmax.f32 %v943, 0.0
        %v954 = vmax.f32 %v948, 0.0
        %959 = vrot.lane.b32.xlu0 %v951, 1
        %v960 = vpop.permute.xlu0 %959
        %961 = vrot.lane.b32.xlu0 %v952, 1
        %v962 = vpop.permute.xlu0 %961
        %963 = vrot.lane.b32.xlu0 %v953, 1
        %v964 = vpop.permute.xlu0 %963
        %965 = vrot.lane.b32.xlu0 %v954, 1
        %v966 = vpop.permute.xlu0 %965
        %v971 = vsel %vm441, 0.0, %v960
        %v972 = vsel %vm441, 0.0, %v962
        %v973 = vsel %vm441, 0.0, %v964
        %v974 = vsel %vm441, 0.0, %v966
        %v975 = vsel %vm289, %v971, 0.0
        %v976 = vsel %vm289, %v972, 0.0
        %v977 = vsel %vm289, %v973, 0.0
        %v978 = vsel %vm289, %v974, 0.0
        %979 = vrot.lane.b32.xlu0 %v951, 127
        %v980 = vpop.permute.xlu0 %979
        %981 = vrot.lane.b32.xlu0 %v952, 127
        %v982 = vpop.permute.xlu0 %981
        %983 = vrot.lane.b32.xlu0 %v953, 127
        %v984 = vpop.permute.xlu0 %983
        %985 = vrot.lane.b32.xlu0 %v954, 127
        %v986 = vpop.permute.xlu0 %985
        %v991 = vsel %vm462, %v980, 0.0
        %v992 = vsel %vm462, %v982, 0.0
        %v993 = vsel %vm462, %v984, 0.0
        %v994 = vsel %vm462, %v986, 0.0
        %v995 = vsel %vm290, %v991, 0.0
        %v996 = vsel %vm290, %v992, 0.0
        %v997 = vsel %vm290, %v993, 0.0
        %v998 = vsel %vm290, %v994, 0.0
        %s999 = scalar_lea.vmem %s3, 96
        %v1000 = vld [vmem:[%s999] sm:$0xff]
        %v1001 = vld [vmem:[%s999 + $0x8] sm:$0xff]
        %v1002 = vld [vmem:[%s999 + $0x10] sm:$0xff]
        %v1003 = vld [vmem:[%s999 + $0x18] sm:$0xff]
        %s1004 = scalar_lea.vmem %s4, 96
        %v1005 = vld [vmem:[%s1004] sm:$0xff]
        %v1006 = vld [vmem:[%s1004 + $0x8] sm:$0xff]
        %v1007 = vld [vmem:[%s1004 + $0x10] sm:$0xff]
        %v1008 = vld [vmem:[%s1004 + $0x18] sm:$0xff]
        %1010 = vset.pattern.permute.xlu0 0
        %1011 = vperm.xlu0 %1010, %v1005
        %v1012 = vpop.permute.xlu0 %1011
        %1015 = vset.pattern.permute.xlu0 0
        %1016 = vperm.xlu0 %1015, %v1006
        %v1017 = vpop.permute.xlu0 %1016
        %1020 = vset.pattern.permute.xlu0 0
        %1021 = vperm.xlu0 %1020, %v1007
        %v1022 = vpop.permute.xlu0 %1021
        %1025 = vset.pattern.permute.xlu0 0
        %1026 = vperm.xlu0 %1025, %v1008
        %v1027 = vpop.permute.xlu0 %1026
        %v1030 = vsel %vm499, %v1000, 0
        %v1033 = vsel %vm499, %v1001, 0
        %v1036 = vsel %vm499, %v1002, 0
        %v1039 = vsel %vm499, %v1003, 0
        %1041 = vmatprep.subr.mxu0 0.0
        %1042 = vmatpush1.msra.mxu0 0.0
        %1043 = vmatprep.subr.mxu0 0.0
        %1044 = vmatpush1.msra.mxu0 0.0
        %1045 = vmatprep.subr.mxu0 0.0
        %1046 = vmatpush1.msra.mxu0 0.0
        %1047 = vmatprep.subr.mxu0 0.0
        %1048 = vmatpush1.msra.mxu0 0.0
        %1049 = vmatprep.subr.mxu0 0.0
        %1050 = vmatpush1.msra.mxu0 %v998
        %1051 = vmatprep.subr.mxu0 0.0
        %1052 = vmatpush1.msra.mxu0 %v997
        %1053 = vmatprep.subr.mxu0 0.0
        %1054 = vmatpush1.msra.mxu0 %v996
        %1055 = vmatprep.subr.mxu0 0.0
        %1056 = vmatpush1.msra.mxu0 %v995
        %1057 = vmatprep.subr.mxu0 0.0
        %1058 = vmatpush1.msra.mxu0 %v954
        %1059 = vmatprep.subr.mxu0 0.0
        %1060 = vmatpush1.msra.mxu0 %v953
        %1061 = vmatprep.subr.mxu0 0.0
        %1062 = vmatpush1.msra.mxu0 %v952
        %1063 = vmatprep.subr.mxu0 0.0
        %1064 = vmatpush1.msra.mxu0 %v951
        %1065 = vmatprep.subr.mxu0 0.0
        %1066 = vmatpush1.msra.mxu0 %v978
        %1067 = vmatprep.subr.mxu0 0.0
        %1068 = vmatpush1.msra.mxu0 %v977
        %1069 = vmatprep.subr.mxu0 0.0
        %1070 = vmatpush1.msra.mxu0 %v976
        %1071 = vmatprep.subr.mxu0 0.0
        %1072 = vmatpush1.msra.mxu0 %v975
        %1073 = vmatprep.subr.mxu0 0.0
        %1074 = vmatpush2.msra.mxu0 0.0
        %1075 = vmatprep.subr.mxu0 0.0
        %1076 = vmatpush2.msra.mxu0 0.0
        %1077 = vmatprep.subr.mxu0 0.0
        %1078 = vmatpush2.msra.mxu0 0.0
        %1079 = vmatprep.subr.mxu0 0.0
        %1080 = vmatpush2.msra.mxu0 0.0
        %1081 = vmatprep.subr.mxu0 0.0
        %1082 = vmatpush2.msra.mxu0 0.0
        %1083 = vmatprep.subr.mxu0 0.0
        %1084 = vmatpush2.msra.mxu0 0.0
        %1085 = vmatprep.subr.mxu0 0.0
        %1086 = vmatpush2.msra.mxu0 0.0
        %1087 = vmatprep.subr.mxu0 0.0
        %1088 = vmatpush2.msra.mxu0 0.0
        %1089 = vmatprep.subr.mxu0 0.0
        %1090 = vmatpush2.msra.mxu0 0.0
        %1091 = vmatprep.subr.mxu0 0.0
        %1092 = vmatpush2.msra.mxu0 0.0
        %1093 = vmatprep.subr.mxu0 0.0
        %1094 = vmatpush2.msra.mxu0 0.0
        %1095 = vmatprep.subr.mxu0 0.0
        %1096 = vmatpush2.msra.mxu0 0.0
        %1097 = vmatprep.subr.mxu0 0.0
        %1098 = vmatpush2.msra.mxu0 0.0
        %1099 = vmatprep.subr.mxu0 0.0
        %1100 = vmatpush2.msra.mxu0 0.0
        %1101 = vmatprep.subr.mxu0 0.0
        %1102 = vmatpush2.msra.mxu0 0.0
        %1103 = vmatprep.subr.mxu0 0.0
        %1104 = vmatpush2.msra.mxu0 0.0
        %1105 = vmatprep.mubr.f32.mxu0 0.0
        %1106 = vmatmul.mubr.f32.gmra.mxu0 %v1030
        %v1107 = vpop.f32.mrf.mxu0
        %v1108 = vadd.f32 %v1012, %v1107
        %v1109 = vpop.f32.mrf.mxu0
        %1110 = vmatprep.mubr.f32.mxu0 0.0
        %1111 = vmatmul.mubr.f32.gmra.mxu0 %v1033
        %v1112 = vpop.f32.mrf.mxu0
        %v1113 = vadd.f32 %v1017, %v1112
        %v1114 = vpop.f32.mrf.mxu0
        %1115 = vmatprep.mubr.f32.mxu0 0.0
        %1116 = vmatmul.mubr.f32.gmra.mxu0 %v1036
        %v1117 = vpop.f32.mrf.mxu0
        %v1118 = vadd.f32 %v1022, %v1117
        %v1119 = vpop.f32.mrf.mxu0
        %1120 = vmatprep.mubr.f32.mxu0 0.0
        %1121 = vmatmul.mubr.f32.gmra.mxu0 %v1039
        %v1122 = vpop.f32.mrf.mxu0
        %v1123 = vadd.f32 %v1027, %v1122
        %v1124 = vpop.f32.mrf.mxu0
        %1125 = vdwg.mxu0
        %v1126 = vadd.f32 %v772, %v1108
        %v1127 = vadd.f32 %v773, %v1113
        %v1128 = vadd.f32 %v774, %v1118
        %v1129 = vadd.f32 %v775, %v1123
        %v1130 = vld [vmem:[%s5] sm:$0xf]
        %v1131 = vld [vmem:[%s6] sm:$0xf]
        %1133 = vset.pattern.permute.xlu0 0
        %1134 = vperm.xlu0 %1133, %v1131
        %v1135 = vpop.permute.xlu0 %1134
        %vm1137 = vcmask 261120
        %v1139 = vsel %vm1137, %v1130, 0
        %1141 = vmatprep.subr.mxu0 0.0
        %1142 = vmatpush1.msra.mxu0 0.0
        %1143 = vmatprep.subr.mxu0 0.0
        %1144 = vmatpush1.msra.mxu0 0.0
        %1145 = vmatprep.subr.mxu0 0.0
        %1146 = vmatpush1.msra.mxu0 0.0
        %1147 = vmatprep.subr.mxu0 0.0
        %1148 = vmatpush1.msra.mxu0 0.0
        %1149 = vmatprep.subr.mxu0 0.0
        %1150 = vmatpush1.msra.mxu0 0.0
        %1151 = vmatprep.subr.mxu0 0.0
        %1152 = vmatpush1.msra.mxu0 0.0
        %1153 = vmatprep.subr.mxu0 0.0
        %1154 = vmatpush1.msra.mxu0 0.0
        %1155 = vmatprep.subr.mxu0 0.0
        %1156 = vmatpush1.msra.mxu0 0.0
        %1157 = vmatprep.subr.mxu0 0.0
        %1158 = vmatpush1.msra.mxu0 0.0
        %1159 = vmatprep.subr.mxu0 0.0
        %1160 = vmatpush1.msra.mxu0 0.0
        %1161 = vmatprep.subr.mxu0 0.0
        %1162 = vmatpush1.msra.mxu0 0.0
        %1163 = vmatprep.subr.mxu0 0.0
        %1164 = vmatpush1.msra.mxu0 0.0
        %1165 = vmatprep.subr.mxu0 0.0
        %1166 = vmatpush1.msra.mxu0 %v1129
        %1167 = vmatprep.subr.mxu0 0.0
        %1168 = vmatpush1.msra.mxu0 %v1128
        %1169 = vmatprep.subr.mxu0 0.0
        %1170 = vmatpush1.msra.mxu0 %v1127
        %1171 = vmatprep.subr.mxu0 0.0
        %1172 = vmatpush1.msra.mxu0 %v1126
        %1173 = vmatprep.subr.mxu0 0.0
        %1174 = vmatpush2.msra.mxu0 0.0
        %1175 = vmatprep.subr.mxu0 0.0
        %1176 = vmatpush2.msra.mxu0 0.0
        %1177 = vmatprep.subr.mxu0 0.0
        %1178 = vmatpush2.msra.mxu0 0.0
        %1179 = vmatprep.subr.mxu0 0.0
        %1180 = vmatpush2.msra.mxu0 0.0
        %1181 = vmatprep.subr.mxu0 0.0
        %1182 = vmatpush2.msra.mxu0 0.0
        %1183 = vmatprep.subr.mxu0 0.0
        %1184 = vmatpush2.msra.mxu0 0.0
        %1185 = vmatprep.subr.mxu0 0.0
        %1186 = vmatpush2.msra.mxu0 0.0
        %1187 = vmatprep.subr.mxu0 0.0
        %1188 = vmatpush2.msra.mxu0 0.0
        %1189 = vmatprep.subr.mxu0 0.0
        %1190 = vmatpush2.msra.mxu0 0.0
        %1191 = vmatprep.subr.mxu0 0.0
        %1192 = vmatpush2.msra.mxu0 0.0
        %1193 = vmatprep.subr.mxu0 0.0
        %1194 = vmatpush2.msra.mxu0 0.0
        %1195 = vmatprep.subr.mxu0 0.0
        %1196 = vmatpush2.msra.mxu0 0.0
        %1197 = vmatprep.subr.mxu0 0.0
        %1198 = vmatpush2.msra.mxu0 0.0
        %1199 = vmatprep.subr.mxu0 0.0
        %1200 = vmatpush2.msra.mxu0 0.0
        %1201 = vmatprep.subr.mxu0 0.0
        %1202 = vmatpush2.msra.mxu0 0.0
        %1203 = vmatprep.subr.mxu0 0.0
        %1204 = vmatpush2.msra.mxu0 0.0
        %1205 = vmatprep.mubr.f32.mxu0 0.0
        %1206 = vmatmul.mubr.f32.gmra.mxu0 %v1139
        %v1207 = vpop.f32.mrf.mxu0
        %v1208 = vadd.f32 %v1135, %v1207
        %v1209 = vpop.f32.mrf.mxu0
        %1210 = vdwg.mxu0
        %1211 = vst [vmem:[%s269] sm:$0xf] %v1208
        %s1212 = sand.u32 %s181, 1
        %s1213 = scalar_lea.sflag [#allocation3], %s1212
        %s1214 = sand.u32 %s181, 1
        %s1215 = smul.addr %s1214, 4
        %s1216 = scalar_lea.vmem [#allocation2], %s1215
        // Predicated region
        $region49: #{tpu_custom_call.1} parent=47 // pred_check
          %p1217 = pneg %p191
        $region50: #{tpu_custom_call.1} parent=47 // pred_check_branch
          %1219 = sbr.rel (%p1217) target = $region52
        $region51: #{tpu_custom_call.1} parent=47 // pred_region
          %s1221 = ssub.s32 64, 64
          %1222 = vsyncadd %s1213, %s1221
          %s1223 = smul.addr %s21, 64
          %s1224 = scalar_lea.hbm %s7, %s1223
          %s1226 = sshll.u32 %s1216, 4
          %s1227 = int_to_ptr.vmem [resolvable:$true] %s1226
          %1229 = dma.vmem_to_hbm [thread:$0]  %s1227, 64, %s1224, %s1213
        $region52: #{tpu_custom_call.1} parent=47 // pred_fallthru
          _
      $region48: #{tpu_custom_call.1} parent=5 // pred_fallthru
        _
      %p1230 = scmp.le.s32.totalorder 2, %s16
      // Predicated region
      $region53: #{tpu_custom_call.1} parent=5 // pred_check
        %p1231 = pneg %p1230
      $region54: #{tpu_custom_call.1} parent=5 // pred_check_branch
        %1233 = sbr.rel (%p1231) target = $region56
      $region55: #{tpu_custom_call.1} parent=5 // pred_region
        %s1234 = ssub.s32 %s16, 2
        // Predicated region
        $region57: #{tpu_custom_call.1} parent=55 // pred_check
          %p1235 = pneg %p197
        $region58: #{tpu_custom_call.1} parent=55 // pred_check_branch
          %1237 = sbr.rel (%p1235) target = $region60
        $region59: #{tpu_custom_call.1} parent=55 // pred_region
          %s1238 = sand.u32 %s182, 1
          %s1239 = scalar_lea.sflag [#allocation3], %s1238
          %s1240 = sand.u32 %s182, 1
          %s1241 = smul.addr %s1240, 4
          %s1242 = scalar_lea.vmem [#allocation2], %s1241
          %1243 = dma.done %s1239, 64
        $region60: #{tpu_custom_call.1} parent=55 // pred_fallthru
          _
      $region56: #{tpu_custom_call.1} parent=5 // pred_fallthru
        _
    $region6: #{tpu_custom_call.1} parent=1 // loop_footer
      %s20 = sadd.s32 1, %s16
    $region7: #{tpu_custom_call.1} parent=1 // loop_footer_branch
      %15 = sbr.rel target = $region3
    $region8: #{tpu_custom_call.1} parent=1 // loop_exit
      _
    %1244 = vsyncpa [#allocation3], 1
    %s1245 = scalar_lea.sflag [#allocation3], 1
    %1246 = vsyncpa %s1245, 1

</llo_original>
